<compile_context>
chip_gen: v6e
topology: v6e:2x2x1
jax: 0.10.0
libtpu: 0.0.40
codegen_flags: <defaults>
</compile_context>

<pallas_src>
import jax
import jax.numpy as jnp
from jax.experimental import pallas as pl
from jax.experimental.pallas import tpu as pltpu


def _mask_nll_kernel(inp_ref, tgt_ref, mask_ref, out_ref):
    i = pl.program_id(0)
    tb = inp_ref.shape[0]
    start = pl.multiple_of(i * tb, 8)          # tb is always a multiple of 8

    inp = inp_ref[...]                         # (tb, V) f32 probabilities (streamed)
    tgt = tgt_ref[pl.ds(start, tb), :]         # (tb, 1) int32 class ids (VMEM-resident)
    msk = mask_ref[pl.ds(start, tb), :]        # (tb, 1) f32 {0.0, 1.0}  (VMEM-resident)

    # "gather" inp[b, tgt[b]]: lane compare + masked lane reduce, no one-hot temp.
    vocab_ids = jax.lax.broadcasted_iota(jnp.int32, inp.shape, 1)     # (tb, V)
    gathered = jnp.sum(jnp.where(vocab_ids == tgt, inp, 0.0),
                       axis=1, keepdims=True)                          # (tb, 1)

    ce = -jnp.log(gathered)                                            # (tb, 1)
    masked_ce = jnp.where(msk != 0.0, ce, 0.0)   # select (not multiply): no inf*0 NaN

    loss_partial = jnp.sum(masked_ce)            # per-tile scalar partials
    count_partial = jnp.sum(msk)

    # Lane-dense partial output block (1, 8, 128):
    #   sublane 0 -> loss partial sum, sublane 1 -> mask count, rest zeros.
    sub = jax.lax.broadcasted_iota(jnp.int32, out_ref.shape, 1)
    out_ref[...] = jnp.where(sub == 0, loss_partial,
                             jnp.where(sub == 1, count_partial, 0.0))


def _round_up(x, m):
    return (x + m - 1) // m * m


def mask_nll_loss(inp, target, mask, *, tb=1024):
    """inp: (B, V) probabilities; target: (B,) int; mask: (B,) bool -> scalar f32."""
    B, V = inp.shape

    # Tile sizing: keep one inp block around ~4 MiB (double-buffered -> ~8 MiB),
    # clamp to the (8-padded) batch, keep tb a multiple of 8.
    target_block_bytes = 4 * 1024 * 1024
    tb_cap = max(8, (target_block_bytes // (V * 4)) // 8 * 8)
    tb = max(8, min(_round_up(tb, 8), tb_cap, _round_up(B, 8)))
    Bp = _round_up(B, tb)
    num_tiles = Bp // tb

    inp_f = inp.astype(jnp.float32)
    tgt2d = target.astype(jnp.int32).reshape(B, 1)
    mask2d = mask.astype(jnp.float32).reshape(B, 1)
    if Bp != B:
        pad = Bp - B
        inp_f = jnp.pad(inp_f, ((0, pad), (0, 0)), constant_values=1.0)
        tgt2d = jnp.pad(tgt2d, ((0, pad), (0, 0)))          # class 0
        mask2d = jnp.pad(mask2d, ((0, pad), (0, 0)))        # padded rows masked out

    # Scoped-VMEM budget: streamed inp (x2 buffers) + resident tgt/mask
    # ((Bp,1) pads to (8,128) tiles) + tiny output. Only raise the limit if the
    # estimate exceeds the smallest default (16 MiB on v5e); cap at v7x physical.
    resident_bytes = 2 * (Bp // 8) * 8 * 128 * 4
    est = 2 * tb * V * 4 + resident_bytes + (1 << 20)
    vmem_limit = (min(int(est * 3 // 2), 64 * 1024 * 1024)
                  if est > 12 * 1024 * 1024 else None)

    partials = pl.pallas_call(
        _mask_nll_kernel,
        out_shape=jax.ShapeDtypeStruct((num_tiles, 8, 128), jnp.float32),
        grid=(num_tiles,),
        in_specs=[
            pl.BlockSpec((tb, V), lambda i: (i, 0)),        # streamed, big tiles
            pl.BlockSpec((Bp, 1), lambda i: (0, 0)),        # VMEM-resident target
            pl.BlockSpec((Bp, 1), lambda i: (0, 0)),        # VMEM-resident mask
        ],
        out_specs=pl.BlockSpec((1, 8, 128), lambda i: (i, 0, 0)),
        compiler_params=pltpu.CompilerParams(
            dimension_semantics=("parallel",),   # no cross-tile carry -> both TCs on v7x
            vmem_limit_bytes=vmem_limit,
        ),
    )(inp_f, tgt2d, mask2d)

    loss_sum = jnp.sum(partials[:, 0, 0])
    count = jnp.sum(partials[:, 1, 0])
    # NOTE: all-False mask gives 0/0 -> NaN, matching torch.mean of an empty select.
    return loss_sum / count


def mask_nll_loss_ref(inp, target, mask):
    gathered = jnp.take_along_axis(inp, target.reshape(-1, 1).astype(jnp.int32), axis=1)
    ce = -jnp.log(gathered)[:, 0]
    m = mask.astype(jnp.float32)
    return jnp.sum(ce * m) / jnp.sum(m)


if __name__ == "__main__":
    key = jax.random.PRNGKey(0)
    k1, k2, k3 = jax.random.split(key, 3)

    # Small shapes consistent with the module: batch of decoder steps x vocab.
    B, V = 16, 128
    logits = jax.random.normal(k1, (B, V), dtype=jnp.float32)
    inp = jax.nn.softmax(logits, axis=-1)                  # probabilities, as the module expects
    target = jax.random.randint(k2, (B,), 0, V, dtype=jnp.int32)
    mask = jax.random.bernoulli(k3, 0.7, (B,))
    mask = mask.at[0].set(True)                            # at least one valid element

    loss = mask_nll_loss(inp, target, mask)
    jax.block_until_ready(loss)
    ref = mask_nll_loss_ref(inp, target, mask)
    assert jnp.allclose(loss, ref, rtol=1e-5, atol=1e-6), (loss, ref)

    # Exercise the multi-tile + padding path (grid > 1, parallel partial sums).
    k4, k5, k6 = jax.random.split(jax.random.PRNGKey(1), 3)
    B2, V2 = 20, 256
    inp2 = jax.nn.softmax(jax.random.normal(k4, (B2, V2), jnp.float32), axis=-1)
    target2 = jax.random.randint(k5, (B2,), 0, V2, dtype=jnp.int32)
    mask2 = jax.random.bernoulli(k6, 0.5, (B2,))
    mask2 = mask2.at[0].set(True)
    loss2 = mask_nll_loss(inp2, target2, mask2, tb=8)
    jax.block_until_ready(loss2)
    ref2 = mask_nll_loss_ref(inp2, target2, mask2)
    assert jnp.allclose(loss2, ref2, rtol=1e-5, atol=1e-6), (loss2, ref2)

    print("KERNEL_OK")
</pallas_src>

<mosaic_0001>
module attributes {stable_mosaic.version = 11 : i64} {
  func.func @_mask_nll_kernel(%arg0: i32, %arg1: memref<16x128xf32, #tpu.memory_space<vmem>>, %arg2: memref<16x1xi32, #tpu.memory_space<vmem>>, %arg3: memref<16x1xf32, #tpu.memory_space<vmem>>, %arg4: memref<1x8x128xf32, #tpu.memory_space<vmem>>) attributes {dimension_semantics = [#tpu.dimension_semantics<parallel>], iteration_bounds = array<i64: 1>, scalar_prefetch = 0 : i64, scratch_operands = 0 : i64, tpu.core_type = #tpu.core_type<tc>, window_params = [{transform_indices = @transform_0, window_bounds = array<i64: 16, 128>}, {pipeline_mode = #tpu.pipeline_mode<synchronous>, transform_indices = @transform_1, window_bounds = array<i64: 16, 1>}, {pipeline_mode = #tpu.pipeline_mode<synchronous>, transform_indices = @transform_2, window_bounds = array<i64: 16, 1>}, {transform_indices = @transform_3, window_bounds = array<i64: 1, 8, 128>}]} {
    %c16_i32 = arith.constant 16 : i32
    %0 = arith.muli %arg0, %c16_i32 : i32
    %1 = tpu.assume_multiple %0, 8 : i32
    %c0 = arith.constant 0 : index
    %c0_0 = arith.constant 0 : index
    %2 = vector.load %arg1[%c0, %c0_0] : memref<16x128xf32, #tpu.memory_space<vmem>>, vector<16x128xf32>
    %3 = arith.index_cast %1 : i32 to index
    %c0_1 = arith.constant 0 : index
    %4 = vector.load %arg2[%3, %c0_1] : memref<16x1xi32, #tpu.memory_space<vmem>>, vector<16x1xi32>
    %5 = arith.index_cast %1 : i32 to index
    %c0_2 = arith.constant 0 : index
    %6 = vector.load %arg3[%5, %c0_2] : memref<16x1xf32, #tpu.memory_space<vmem>>, vector<16x1xf32>
    %7 = tpu.iota {dimensions = array<i32: 1>} : vector<16x128xi32>
    %8 = vector.broadcast %4 : vector<16x1xi32> to vector<16x128xi32>
    %9 = arith.cmpi eq, %7, %8 : vector<16x128xi32>
    %cst = arith.constant 0.000000e+00 : f32
    %10 = vector.broadcast %cst : f32 to vector<16x128xf32>
    %11 = arith.select %9, %2, %10 : vector<16x128xi1>, vector<16x128xf32>
    %cst_3 = arith.constant dense<0.000000e+00> : vector<16xf32>
    %12 = vector.multi_reduction <add>, %11, %cst_3 [1] : vector<16x128xf32> to vector<16xf32>
    %13 = vector.shape_cast %12 : vector<16xf32> to vector<16x1xf32>
    %14 = math.log %13 : vector<16x1xf32>
    %cst_4 = arith.constant 0.000000e+00 : f32
    %15 = vector.broadcast %cst_4 : f32 to vector<16x1xf32>
    %16 = arith.subf %15, %14 : vector<16x1xf32>
    %cst_5 = arith.constant 0.000000e+00 : f32
    %17 = vector.broadcast %cst_5 : f32 to vector<16x1xf32>
    %18 = arith.cmpf one, %6, %17 : vector<16x1xf32>
    %cst_6 = arith.constant 0.000000e+00 : f32
    %19 = vector.broadcast %cst_6 : f32 to vector<16x1xf32>
    %20 = arith.select %18, %16, %19 : vector<16x1xi1>, vector<16x1xf32>
    %21 = vector.shape_cast %20 : vector<16x1xf32> to vector<1x16x1xf32>
    %cst_7 = arith.constant dense<0.000000e+00> : vector<1xf32>
    %22 = vector.multi_reduction <add>, %21, %cst_7 [1, 2] : vector<1x16x1xf32> to vector<1xf32>
    %23 = vector.shape_cast %22 : vector<1xf32> to vector<1x1x1xf32>
    %24 = vector.extract %23[0, 0, 0] : f32 from vector<1x1x1xf32>
    %25 = vector.shape_cast %6 : vector<16x1xf32> to vector<1x16x1xf32>
    %cst_8 = arith.constant dense<0.000000e+00> : vector<1xf32>
    %26 = vector.multi_reduction <add>, %25, %cst_8 [1, 2] : vector<1x16x1xf32> to vector<1xf32>
    %27 = vector.shape_cast %26 : vector<1xf32> to vector<1x1x1xf32>
    %28 = vector.extract %27[0, 0, 0] : f32 from vector<1x1x1xf32>
    %29 = tpu.iota {dimensions = array<i32: 1>} : vector<1x8x128xi32>
    %c0_i32 = arith.constant 0 : i32
    %30 = vector.broadcast %c0_i32 : i32 to vector<1x8x128xi32>
    %31 = arith.cmpi eq, %29, %30 : vector<1x8x128xi32>
    %c1_i32 = arith.constant 1 : i32
    %32 = vector.broadcast %c1_i32 : i32 to vector<1x8x128xi32>
    %33 = arith.cmpi eq, %29, %32 : vector<1x8x128xi32>
    %cst_9 = arith.constant 0.000000e+00 : f32
    %34 = vector.broadcast %28 : f32 to vector<1x8x128xf32>
    %35 = vector.broadcast %cst_9 : f32 to vector<1x8x128xf32>
    %36 = arith.select %33, %34, %35 : vector<1x8x128xi1>, vector<1x8x128xf32>
    %37 = vector.broadcast %24 : f32 to vector<1x8x128xf32>
    %38 = arith.select %31, %37, %36 : vector<1x8x128xi1>, vector<1x8x128xf32>
    %c0_10 = arith.constant 0 : index
    %c0_11 = arith.constant 0 : index
    %c0_12 = arith.constant 0 : index
    %39 = vector.load %arg4[%c0_10, %c0_11, %c0_12] : memref<1x8x128xf32, #tpu.memory_space<vmem>>, vector<1x8x128xf32>
    tpu.vector_store %arg4[%c0_10, %c0_11, %c0_12], %38 {strides = array<i32>} : memref<1x8x128xf32, #tpu.memory_space<vmem>>, vector<1x8x128xf32>,
    return
  }
  func.func @transform_0(%arg0: i32) -> (i32, i32) {
    %c0_i32 = arith.constant 0 : i32
    %c0_i32_0 = arith.constant 0 : i32
    return %arg0, %c0_i32 : i32, i32
  }
  func.func @transform_1(%arg0: i32) -> (i32, i32) {
    %c0_i32 = arith.constant 0 : i32
    %c0_i32_0 = arith.constant 0 : i32
    %c0_i32_1 = arith.constant 0 : i32
    return %c0_i32, %c0_i32_0 : i32, i32
  }
  func.func @transform_2(%arg0: i32) -> (i32, i32) {
    %c0_i32 = arith.constant 0 : i32
    %c0_i32_0 = arith.constant 0 : i32
    %c0_i32_1 = arith.constant 0 : i32
    return %c0_i32, %c0_i32_0 : i32, i32
  }
  func.func @transform_3(%arg0: i32) -> (i32, i32, i32) {
    %c0_i32 = arith.constant 0 : i32
    %c0_i32_0 = arith.constant 0 : i32
    %c0_i32_1 = arith.constant 0 : i32
    return %arg0, %c0_i32, %c0_i32_0 : i32, i32, i32
  }
}

</mosaic_0001>

<llo_original>
// kernel: tpu_custom_call.1
$region0: #{tpu_custom_call.1}
  #allocation0 [shape = 'u32[]', space=smem, size = 0x4, offset = 0x4, fixed_abs, tag = 'smem constant byte address 0x4 - core index']
  #allocation1 [shape = 'u32[144,128]{1,0:T(1,128)}', space=vmem, size = 0x12000, scoped, tag = 'internal scratch']
  %s0 = inlined_call_operand.vmem [shape: f32[16,128], index: 0, kind: input, shape index: {}]
  %s1 = inlined_call_operand.vmem [shape: s32[16,1], index: 1, kind: input, shape index: {}]
  %s2 = inlined_call_operand.vmem [shape: f32[16,1], index: 2, kind: input, shape index: {}]
  %s3 = inlined_call_operand.hbm [shape: f32[1,8,128], index: 3, kind: output, shape index: {}]
  %s4 = sld [smem:[#allocation0]]
  $region22: #{tpu_custom_call.1} parent=0
    _
  %s6 = ssub.s32 1, %s4
  %s7 = scalar_select 0, %s6, %s4
  $region1: #{tpu_custom_call.1} parent=0
    #allocation2 [shape = 'u8[4096]{0}', space=vmem, size = 0x1000, scoped, tag = 'output window, operand 0, single buffered']
    #allocation3 [shape = 's32[1]{0}', space=sflag, size = 0x4, scoped, tag = 'scoped memory for tpu_custom_call.1']
    %8 = vsyncpa [#allocation3], 0
    // Predicated region
    $region2: #{tpu_custom_call.1} parent=1 // pred_check
      _
    $region3: #{tpu_custom_call.1} parent=1 // pred_check_branch
      %10 = sbr.rel (0) target = $region5
    $region4: #{tpu_custom_call.1} parent=1 // pred_region
      _
    $region5: #{tpu_custom_call.1} parent=1 // pred_fallthru
      _
    // Predicated region
    $region6: #{tpu_custom_call.1} parent=1 // pred_check
      _
    $region7: #{tpu_custom_call.1} parent=1 // pred_check_branch
      %12 = sbr.rel (0) target = $region9
    $region8: #{tpu_custom_call.1} parent=1 // pred_region
      _
    $region9: #{tpu_custom_call.1} parent=1 // pred_fallthru
      _
    // Predicated region
    $region10: #{tpu_custom_call.1} parent=1 // pred_check
      _
    $region11: #{tpu_custom_call.1} parent=1 // pred_check_branch
      %14 = sbr.rel (0) target = $region13
    $region12: #{tpu_custom_call.1} parent=1 // pred_region
      _
    $region13: #{tpu_custom_call.1} parent=1 // pred_fallthru
      _
    %s15 = smul.u32 0, 16
    %v16 = vld [vmem:[%s0] sm:$0xff]
    %v17 = vld [vmem:[%s0 + $0x8] sm:$0xff]
    %s18 = scalar_lea.vmem %s1, %s15
    %v19 = vld [vmem:[%s18] sm:$0xff]
    %v20 = vld [vmem:[%s18 + $0x8] sm:$0xff]
    %s21 = scalar_lea.vmem %s2, %s15
    %v22 = vld [vmem:[%s21] sm:$0xff]
    %v23 = vld [vmem:[%s21 + $0x8] sm:$0xff]
    %v24 = vlaneseq
    %v25 = vand.u32 %v24, 127
    %26 = vset.pattern.permute.xlu0 0
    %27 = vperm.xlu0 %26, %v19
    %v28 = vpop.permute.xlu0 %27
    %29 = vset.pattern.permute.xlu0 0
    %30 = vperm.xlu0 %29, %v20
    %v31 = vpop.permute.xlu0 %30
    %vm32 = vcmp.eq.s32.totalorder %v25, %v28
    %vm33 = vcmp.eq.s32.totalorder %v25, %v31
    %v34 = vsel %vm32, %v16, 0.0
    %v35 = vsel %vm33, %v17, 0.0
    %36 = vadd.xlane.f32.xlu0 %v34
    %v37 = vpop.xlane.xlu0 %36
    %38 = vadd.xlane.f32.xlu0 %v35
    %v39 = vpop.xlane.xlu0 %38
    %v40 = vlog2.pop %v37
    %v41 = vmul.f32 %v40, 0.6931472
    %v42 = vlog2.pop %v39
    %v43 = vmul.f32 %v42, 0.6931472
    %v44 = vsub.f32 0.0, %v41
    %v45 = vsub.f32 0.0, %v43
    %vm46 = vcmp.ne.f32.partialorder %v22, 0.0
    %vm47 = vcmp.ne.f32.partialorder %v23, 0.0
    %v48 = vsel %vm46, %v44, 0.0
    %v49 = vsel %vm47, %v45, 0.0
    %vm50 = vcmask 7168
    %v51 = vsel %vm50, %v48, 0.0
    %v52 = vsel %vm50, %v49, 0.0
    %v53 = vadd.f32 %v51, %v52
    %54 = vadd.xlane.f32.xlu0 %v53
    %v55 = vpop.xlane.xlu0 %54
    %v56 = vrot.slane %v55, 4
    %v57 = vadd.f32 %v55, %v56
    %v58 = vrot.slane %v57, 2
    %v59 = vadd.f32 %v57, %v58
    %v60 = vrot.slane %v59, 1
    %v61 = vadd.f32 %v59, %v60
    %s62 = vtos %v61
    %v63 = vsel %vm50, %v22, 0.0
    %v64 = vsel %vm50, %v23, 0.0
    %v65 = vadd.f32 %v63, %v64
    %66 = vadd.xlane.f32.xlu0 %v65
    %v67 = vpop.xlane.xlu0 %66
    %v68 = vrot.slane %v67, 4
    %v69 = vadd.f32 %v67, %v68
    %v70 = vrot.slane %v69, 2
    %v71 = vadd.f32 %v69, %v70
    %v72 = vrot.slane %v71, 1
    %v73 = vadd.f32 %v71, %v72
    %s74 = vtos %v73
    %v75 = vlaneseq
    %v76 = vshrl.u32 %v75, 7
    %vm77 = vcmp.eq.s32.totalorder %v76, 0
    %vm78 = vcmp.eq.s32.totalorder %v76, 1
    %v79 = vstv %s74
    %v80 = vsel %vm78, %v79, 0.0
    %v81 = vstv %s62
    %v82 = vsel %vm77, %v81, %v80
    %83 = vst [vmem:[#allocation2] sm:$0xff] %v82
    // Predicated region
    $region14: #{tpu_custom_call.1} parent=1 // pred_check
      _
    $region15: #{tpu_custom_call.1} parent=1 // pred_check_branch
      %85 = sbr.rel (0) target = $region17
    $region16: #{tpu_custom_call.1} parent=1 // pred_region
      %s87 = ssub.s32 128, 128
      %88 = vsyncadd [#allocation3], %s87
      %s90 = sshll.u32 [#allocation2], 4
      %s91 = int_to_ptr.vmem [resolvable:$true] %s90
      %93 = dma.vmem_to_hbm [thread:$0]  %s91, 128, %s3, [#allocation3]
    $region17: #{tpu_custom_call.1} parent=1 // pred_fallthru
      _
    // Predicated region
    $region18: #{tpu_custom_call.1} parent=1 // pred_check
      _
    $region19: #{tpu_custom_call.1} parent=1 // pred_check_branch
      %95 = sbr.rel (0) target = $region21
    $region20: #{tpu_custom_call.1} parent=1 // pred_region
      %96 = dma.done [#allocation3], 128
    $region21: #{tpu_custom_call.1} parent=1 // pred_fallthru
      _
    %97 = vsyncpa [#allocation3], 1

</llo_original>
